<compile_context>
chip_gen: v5e
topology: v5e:2x2
jax: 0.10.0
libtpu: 0.0.40
codegen_flags: <defaults>
</compile_context>

<pallas_src>
import functools
import math

import jax
import jax.numpy as jnp
from jax.experimental import pallas as pl
from jax.experimental.pallas import tpu as pltpu

_SQRT_2_OVER_PI = math.sqrt(2.0 / math.pi)

# ~4 MiB per block -> 2(in) + 2(out) double-buffers = 16 MiB pipelined VMEM.
_TARGET_BLOCK_BYTES = 4 * 1024 * 1024
# Explicit scoped-VMEM limit: above v5e's 16 MiB default, below v7x's 64 MiB.
_VMEM_LIMIT_BYTES = 48 * 1024 * 1024
# Mid-sized inputs get at least this many balanced grid steps (v7x megacore).
_MIN_GRID_STEPS = 4


def _gelu_kernel(x_ref, o_ref, *, compute_dtype):
    # Purely elementwise; tanh lands in the EUP slot and co-issues with
    # loads/stores, so this kernel is HBM-bandwidth bound.  Horner form keeps
    # the VALU count low (matters for bf16 streaming on v7x).
    x = x_ref[...].astype(compute_dtype)
    c1 = jnp.asarray(_SQRT_2_OVER_PI, compute_dtype)
    c2 = jnp.asarray(0.044715 * _SQRT_2_OVER_PI, compute_dtype)
    half = jnp.asarray(0.5, compute_dtype)
    inner = x * (c1 + c2 * (x * x))          # 3 mul + 1 add
    t = jnp.tanh(inner)                      # EUP
    half_x = half * x
    o_ref[...] = (half_x + half_x * t).astype(o_ref.dtype)   # 2 mul + 1 add


def _gelu_jnp(x: jax.Array, compute_dtype) -> jax.Array:
    """Plain-XLA fallback for tiny tensors / <lanes tails (single fused op)."""
    xf = x.astype(compute_dtype)
    c1 = jnp.asarray(_SQRT_2_OVER_PI, compute_dtype)
    c2 = jnp.asarray(0.044715 * _SQRT_2_OVER_PI, compute_dtype)
    y = 0.5 * xf * (1.0 + jnp.tanh(xf * (c1 + c2 * xf * xf)))
    return y.astype(x.dtype)


def gelu(x: jax.Array, *, donate_input: bool = False) -> jax.Array:
    """Tanh-approx GELU matching the PyTorch reference forward."""
    orig_shape = x.shape
    dtype = x.dtype
    total = int(x.size)
    if total == 0:
        return x

    itemsize = jnp.dtype(dtype).itemsize
    # Sublane packing granularity: 8 for 32-bit, 16 for bf16/fp16, 32 for 8-bit.
    sub = max(8, 32 // max(itemsize, 1))
    # Keep bf16 math in bf16 (HBM-bound on v6e/v7x); everything else in f32.
    compute_dtype = jnp.bfloat16 if dtype == jnp.bfloat16 else jnp.float32

    flat = x.reshape(-1)

    # Lane-dense slab: widest lane width (multiple of 128) that divides the
    # element count; otherwise 128 lanes and a plain-jnp tail (no full pad).
    lanes = 128
    for cand in (1024, 512, 256, 128):
        if total >= cand and total % cand == 0:
            lanes = cand
            break
    main_total = (total // lanes) * lanes
    if main_total == 0:
        # Smaller than one 128-wide row: not worth a kernel launch.
        return _gelu_jnp(x, compute_dtype)

    rows = main_total // lanes
    main_flat = flat if main_total == total else flat[:main_total]
    x2d = main_flat.reshape(rows, lanes)

    # Row tile targeting ~4 MiB blocks; always a multiple of the sublane
    # packing (or the full rows dim).  Mid-sized inputs are split into >=4
    # balanced blocks so both v7x TensorCores get multiple full steps.
    bytes_per_row = lanes * itemsize
    target_rows = max(sub, (_TARGET_BLOCK_BYTES // bytes_per_row) // sub * sub)
    if rows <= sub:
        blk_rows = rows                      # block == full rows dim (always legal)
    elif pl.cdiv(rows, target_rows) >= _MIN_GRID_STEPS:
        blk_rows = target_rows
    else:
        blk_rows = max(sub, pl.cdiv(pl.cdiv(rows, _MIN_GRID_STEPS), sub) * sub)
    grid = (pl.cdiv(rows, blk_rows),)

    kernel = functools.partial(_gelu_kernel, compute_dtype=compute_dtype)
    out2d = pl.pallas_call(
        kernel,
        out_shape=jax.ShapeDtypeStruct((rows, lanes), dtype),
        grid_spec=pltpu.PrefetchScalarGridSpec(
            num_scalar_prefetch=0,
            grid=grid,
            in_specs=[pl.BlockSpec((blk_rows, lanes), lambda i: (i, 0))],
            out_specs=pl.BlockSpec((blk_rows, lanes), lambda i: (i, 0)),
        ),
        compiler_params=pltpu.CompilerParams(
            dimension_semantics=("parallel",),
            vmem_limit_bytes=_VMEM_LIMIT_BYTES,
        ),
        input_output_aliases=({0: 0} if donate_input else {}),
    )(x2d)

    out_flat = out2d.reshape(-1)
    if main_total != total:
        tail = _gelu_jnp(flat[main_total:], compute_dtype)  # < lanes elements
        out_flat = jnp.concatenate([out_flat, tail])
    return out_flat.reshape(orig_shape)


def gelu_reference(x: jax.Array) -> jax.Array:
    """Pure-JAX reference identical to the PyTorch forward (f32 internal)."""
    xf = x.astype(jnp.float32)
    return (
        0.5
        * xf
        * (1.0 + jnp.tanh(jnp.sqrt(2.0 / jnp.pi) * (xf + 0.044715 * xf**3)))
    ).astype(x.dtype)


if __name__ == "__main__":
    key = jax.random.PRNGKey(0)
    k1, k2, k3, k4 = jax.random.split(key, 4)

    # Transformer FFN-activation-like small shape: (batch=2, seq=8, hidden=32).
    x = jax.random.normal(k1, (2, 8, 32), dtype=jnp.float32)
    y = jax.block_until_ready(gelu(x))
    assert y.shape == x.shape and y.dtype == x.dtype
    assert jnp.allclose(y, gelu_reference(x), atol=1e-5, rtol=1e-5)

    # Multi-step grid path: 4 balanced blocks of (8 rows x 1024 lanes).
    x_big = jax.random.normal(k2, (4, 64, 128), dtype=jnp.float32)
    y_big = jax.block_until_ready(gelu(x_big))
    assert jnp.allclose(y_big, gelu_reference(x_big), atol=1e-5, rtol=1e-5)

    # Non-divisible size: kernel on the 128-aligned prefix + plain-jnp tail
    # (no whole-tensor pad / slice).
    x_odd = jax.random.normal(k3, (7, 33), dtype=jnp.float32)
    y_odd = jax.block_until_ready(gelu(x_odd))
    assert y_odd.shape == x_odd.shape
    assert jnp.allclose(y_odd, gelu_reference(x_odd), atol=1e-5, rtol=1e-5)

    # bf16 path: in-kernel compute stays bf16 (looser tolerance vs f32 ref).
    x_bf = jax.random.normal(k4, (2, 8, 256), dtype=jnp.bfloat16)
    y_bf = jax.block_until_ready(gelu(x_bf))
    assert y_bf.shape == x_bf.shape and y_bf.dtype == jnp.bfloat16
    assert jnp.allclose(
        y_bf.astype(jnp.float32),
        gelu_reference(x_bf).astype(jnp.float32),
        atol=2e-2,
        rtol=5e-2,
    )

    print("KERNEL_OK")
</pallas_src>

<mosaic_0001>
module attributes {stable_mosaic.version = 11 : i64} {
  func.func @_gelu_kernel(%arg0: i32, %arg1: memref<1x512xf32, #tpu.memory_space<vmem>>, %arg2: memref<1x512xf32, #tpu.memory_space<vmem>>) attributes {dimension_semantics = [#tpu.dimension_semantics<parallel>], iteration_bounds = array<i64: 1>, scalar_prefetch = 0 : i64, scratch_operands = 0 : i64, tpu.core_type = #tpu.core_type<tc>, window_params = [{transform_indices = @transform_0, window_bounds = array<i64: 1, 512>}, {transform_indices = @transform_1, window_bounds = array<i64: 1, 512>}]} {
    %c0 = arith.constant 0 : index
    %c0_0 = arith.constant 0 : index
    %0 = vector.load %arg1[%c0, %c0_0] : memref<1x512xf32, #tpu.memory_space<vmem>>, vector<1x512xf32>
    %1 = arith.mulf %0, %0 : vector<1x512xf32>
    %cst = arith.constant 0.0356774069 : f32
    %2 = vector.broadcast %cst : f32 to vector<1x512xf32>
    %3 = arith.mulf %2, %1 : vector<1x512xf32>
    %cst_1 = arith.constant 0.797884583 : f32
    %4 = vector.broadcast %cst_1 : f32 to vector<1x512xf32>
    %5 = arith.addf %4, %3 : vector<1x512xf32>
    %6 = arith.mulf %0, %5 : vector<1x512xf32>
    %7 = math.tanh %6 : vector<1x512xf32>
    %cst_2 = arith.constant 5.000000e-01 : f32
    %8 = vector.broadcast %cst_2 : f32 to vector<1x512xf32>
    %9 = arith.mulf %8, %0 : vector<1x512xf32>
    %10 = arith.mulf %9, %7 : vector<1x512xf32>
    %11 = arith.addf %9, %10 : vector<1x512xf32>
    %c0_3 = arith.constant 0 : index
    %c0_4 = arith.constant 0 : index
    %12 = vector.load %arg2[%c0_3, %c0_4] : memref<1x512xf32, #tpu.memory_space<vmem>>, vector<1x512xf32>
    tpu.vector_store %arg2[%c0_3, %c0_4], %11 {strides = array<i32>} : memref<1x512xf32, #tpu.memory_space<vmem>>, vector<1x512xf32>,
    return
  }
  func.func @transform_0(%arg0: i32) -> (i32, i32) {
    %c0_i32 = arith.constant 0 : i32
    %c0_i32_0 = arith.constant 0 : i32
    return %arg0, %c0_i32 : i32, i32
  }
  func.func @transform_1(%arg0: i32) -> (i32, i32) {
    %c0_i32 = arith.constant 0 : i32
    %c0_i32_0 = arith.constant 0 : i32
    return %arg0, %c0_i32 : i32, i32
  }
}

</mosaic_0001>

<llo_original>
// kernel: tpu_custom_call.1
$region0: #{tpu_custom_call.1}
  #allocation0 [shape = 'u32[]', space=smem, size = 0x4, offset = 0x4, fixed_abs, tag = 'smem constant byte address 0x4 - core index']
  #allocation1 [shape = 'u32[72,128]{1,0:T(1,128)}', space=vmem, size = 0x9000, scoped, tag = 'internal scratch']
  %s0 = inlined_call_operand.hbm [shape: f32[1,512], index: 0, kind: input, shape index: {}]
  %s1 = inlined_call_operand.hbm [shape: f32[1,512], index: 1, kind: output, shape index: {}]
  %s2 = sld [smem:[#allocation0]]
  $region18: #{tpu_custom_call.1} parent=0
    _
  %s4 = ssub.s32 1, %s2
  %s5 = scalar_select 0, %s4, %s2
  $region1: #{tpu_custom_call.1} parent=0
    #allocation2 [shape = 'u8[2048]{0}', space=vmem, size = 0x800, scoped, tag = 'input window, operand 0, single buffered']
    #allocation3 [shape = 's32[1]{0}', space=sflag, size = 0x4, scoped, tag = 'scoped memory for tpu_custom_call.1']
    #allocation4 [shape = 's32[1]{0}', space=sflag, size = 0x4, scoped, tag = 'scoped memory for tpu_custom_call.1']
    #allocation5 [shape = 'u8[2048]{0}', space=vmem, size = 0x800, scoped, tag = 'output window, operand 0, single buffered']
    %6 = vsyncpa [#allocation3], 0
    %7 = vsyncpa [#allocation4], 0
    // Predicated region
    $region2: #{tpu_custom_call.1} parent=1 // pred_check
      _
    $region3: #{tpu_custom_call.1} parent=1 // pred_check_branch
      %9 = sbr.rel (0) target = $region5
    $region4: #{tpu_custom_call.1} parent=1 // pred_region
      %11 = vsyncadd [#allocation3], 0
      %s13 = sshll.u32 %s0, 4
      %s14 = int_to_ptr.hbm [resolvable:$true] %s13
      %s15 = sshll.u32 [#allocation2], 4
      %s16 = int_to_ptr.vmem [resolvable:$true] %s15
      %18 = dma.hbm_to_vmem [thread:$0]  %s14, 64, %s16, [#allocation3]
    $region5: #{tpu_custom_call.1} parent=1 // pred_fallthru
      _
    // Predicated region
    $region6: #{tpu_custom_call.1} parent=1 // pred_check
      _
    $region7: #{tpu_custom_call.1} parent=1 // pred_check_branch
      %20 = sbr.rel (0) target = $region9
    $region8: #{tpu_custom_call.1} parent=1 // pred_region
      %22 = dma.done [#allocation3], 64
    $region9: #{tpu_custom_call.1} parent=1 // pred_fallthru
      _
    %v23 = vld [vmem:[#allocation2] sm:$0xf]
    %v24 = vmul.f32 %v23, %v23
    %v25 = vmul.f32 %v24, 0.035677407
    %v26 = vadd.f32 %v25, 0.7978846
    %v27 = vmul.f32 %v23, %v26
    %v28 = vtanh.pop %v27
    %v29 = vmul.f32 %v23, 0.5
    %v30 = vmul.f32 %v29, %v28
    %v31 = vadd.f32 %v29, %v30
    %v32 = vlaneseq
    %vm33 = vcmp.ge.s32.totalorder %v32, 0
    %vm34 = vcmp.lt.s32.totalorder %v32, 512
    %vm35 = vmand %vm33, %vm34
    %36 = vst.msk [vmem:[#allocation5] sm:$0xf] %vm35, %v31
    // Predicated region
    $region10: #{tpu_custom_call.1} parent=1 // pred_check
      _
    $region11: #{tpu_custom_call.1} parent=1 // pred_check_branch
      %38 = sbr.rel (0) target = $region13
    $region12: #{tpu_custom_call.1} parent=1 // pred_region
      %40 = vsyncadd [#allocation4], 0
      %s42 = sshll.u32 [#allocation5], 4
      %s43 = int_to_ptr.vmem [resolvable:$true] %s42
      %s44 = sshll.u32 %s1, 4
      %s45 = int_to_ptr.hbm [resolvable:$true] %s44
      %47 = dma.vmem_to_hbm [thread:$0]  %s43, 64, %s45, [#allocation4]
    $region13: #{tpu_custom_call.1} parent=1 // pred_fallthru
      _
    // Predicated region
    $region14: #{tpu_custom_call.1} parent=1 // pred_check
      _
    $region15: #{tpu_custom_call.1} parent=1 // pred_check_branch
      %49 = sbr.rel (0) target = $region17
    $region16: #{tpu_custom_call.1} parent=1 // pred_region
      %51 = dma.done [#allocation4], 64
    $region17: #{tpu_custom_call.1} parent=1 // pred_fallthru
      _
    %52 = vsyncpa [#allocation3], 1
    %53 = vsyncpa [#allocation4], 1

</llo_original>
